<compile_context>
chip_gen: v7x
topology: tpu7x:2x2x1
jax: 0.10.0
libtpu: 0.0.40
codegen_flags: <defaults>
</compile_context>

<pallas_src>
import functools

import jax
import jax.numpy as jnp
from jax.experimental import pallas as pl
from jax.experimental.pallas import tpu as pltpu


def _fused_kernel(xcol_ref,   # (TB*L, 3E)  bf16 im2col slab of padded embeddings
                  wconv_ref,  # (3E, HP)    bf16 conv1d weight, tap-major rows, lane-padded
                  p_ref,      # (PR, OP)    f32 param slab: rows 0:HP wfc_cnn, row HP fused bias
                  out_ref,    # (TB, OP)    f32 lane-dense logits (wrapper keeps [:, :n_cls])
                  *, TB, L):
    HP = wconv_ref.shape[1]

    # Whole-tile conv1d as ONE im2col matmul (bias folded into the out-bias row).
    conv = jnp.dot(xcol_ref[...], wconv_ref[...],
                   preferred_element_type=jnp.float32)            # (TB*L, HP)

    # AdaptiveMaxPool1d(1): sublane-tile regroup + reduce over positions.
    # (L is a multiple of 8 here so the reshape is a pure tile regroup;
    #  it stays correct for other L, possibly with a relayout copy.)
    pooled = jnp.max(conv.reshape(TB, L, HP), axis=1)             # (TB, HP)

    wfc = p_ref[0:HP, :]            # (HP, OP) static aligned slice (rows H:HP zero)
    out_bias = p_ref[HP:HP + 1, :]  # (1, OP)  conv bias + GCN branch + fc bias

    # Final linear, single lane-dense store.
    out_ref[...] = (jnp.dot(pooled, wfc, preferred_element_type=jnp.float32)
                    + out_bias)


def _dense_norm_adj(edge_index, num_nodes):
    """Dense D^-1/2 (A + I) D^-1/2 (matches PyG GCNConv default normalization)."""
    src, dst = edge_index[0], edge_index[1]
    a = jnp.zeros((num_nodes, num_nodes), jnp.float32)
    a = a.at[dst, src].add(1.0)                        # message src -> dst
    a = a + jnp.eye(num_nodes, dtype=jnp.float32)      # self loops
    deg = a.sum(axis=1)
    dinv = jnp.where(deg > 0, 1.0 / jnp.sqrt(deg), 0.0)
    return dinv[:, None] * a * dinv[None, :]


def precompute_gcn_colsum(edge_index, num_nodes):
    """Precompute 1^T A_norm ONCE per graph topology (shape (N,))."""
    return _dense_norm_adj(edge_index, num_nodes).sum(axis=0)


@jax.jit
def simple_web_classifier_forward(token_ids, graph_x, gcn_colsum, params):
    """params: emb (V,E), wconv (H,E,3), bconv (H,), wgcn (H,1), bgcn (H,),
    wfc (2,2H), bfc (2,).  gcn_colsum = precompute_gcn_colsum(edge_index, N)."""
    emb = params["emb"]
    B, L = token_ids.shape
    E = emb.shape[1]
    H = params["wconv"].shape[0]
    n_nodes = graph_x.shape[0]
    n_cls = params["wfc"].shape[0]

    HP = -(-H // 128) * 128           # lane-padded hidden width
    OP = -(-n_cls // 128) * 128       # lane-dense output width
    PR = -(-(HP + 1) // 8) * 8        # sublane-padded param-slab rows

    # ---- glue (fused by XLA into this jit): gather, pad, im2col, bf16 ------
    x_embed = emb[token_ids]                                   # (B, L, E)
    xp = jnp.pad(x_embed, ((0, 0), (1, 1), (0, 0)))            # (B, L+2, E)
    xcol = jnp.concatenate([xp[:, 0:L], xp[:, 1:L + 1], xp[:, 2:L + 2]],
                           axis=-1).reshape(B * L, 3 * E)
    xcol = xcol.astype(jnp.bfloat16)                           # (B*L, 3E) bf16

    wconv = jnp.transpose(params["wconv"], (2, 1, 0)).reshape(3 * E, H)
    wconv_pad = jnp.zeros((3 * E, HP), jnp.bfloat16).at[:, :H].set(
        wconv.astype(jnp.bfloat16))                            # (3E, HP) bf16

    # ---- GCN branch collapsed to a scalar; folded with conv & fc biases ----
    wfc_cnn = params["wfc"][:, :H].T                           # (H, n_cls)
    wfc_gcn = params["wfc"][:, H:].T                           # (H, n_cls)
    s = jnp.dot(gcn_colsum, graph_x.astype(jnp.float32)[:, 0]) # 1^T A_norm x
    gcn_mean = (s / n_nodes) * params["wgcn"][:, 0] + params["bgcn"]   # (H,)
    out_bias = (params["bconv"] @ wfc_cnn                      # bias commutes with max-pool
                + gcn_mean @ wfc_gcn
                + params["bfc"])                               # (n_cls,)

    slab = jnp.zeros((PR, OP), jnp.float32)
    slab = slab.at[:H, :n_cls].set(wfc_cnn)
    slab = slab.at[HP, :n_cls].set(out_bias)                   # (PR, OP) f32

    # ---- batch-tiled grid: pipelined DMA, "parallel" for v7x dual-TC -------
    TB = B
    if B % 8 == 0:
        TB = min(B, 256)
        while B % TB:
            TB //= 2
    grid = (B // TB,)

    flops = 2 * (B * L * 3 * E * HP + B * HP * OP)
    bytes_accessed = (int(xcol.size) * 2 + int(wconv_pad.size) * 2
                      + int(slab.size) * 4 + B * OP * 4)

    kernel = functools.partial(_fused_kernel, TB=TB, L=L)
    out = pl.pallas_call(
        kernel,
        out_shape=jax.ShapeDtypeStruct((B, OP), jnp.float32),
        grid=grid,
        in_specs=[
            pl.BlockSpec((TB * L, 3 * E), lambda i: (i, 0)),   # activations (tiled)
            pl.BlockSpec((3 * E, HP), lambda i: (0, 0)),       # conv weight (resident)
            pl.BlockSpec((PR, OP), lambda i: (0, 0)),          # fused param slab (resident)
        ],
        out_specs=pl.BlockSpec((TB, OP), lambda i: (i, 0)),
        compiler_params=pltpu.CompilerParams(
            dimension_semantics=("parallel",),
            vmem_limit_bytes=32 * 1024 * 1024),
        cost_estimate=pl.CostEstimate(flops=flops, transcendentals=0,
                                      bytes_accessed=bytes_accessed),
    )(xcol, wconv_pad, slab)
    return out[:, :n_cls]


def _reference_forward(token_ids, graph_x, edge_index, params):
    """Pure-JAX f32 reference with identical semantics (correctness check)."""
    emb = params["emb"]
    H = params["wconv"].shape[0]
    x_embed = emb[token_ids]                                   # (B, L, E)
    x_ncl = jnp.transpose(x_embed, (0, 2, 1))                  # (B, E, L)
    xp = jnp.pad(x_ncl, ((0, 0), (0, 0), (1, 1)))              # (B, E, L+2)
    L = token_ids.shape[1]
    conv = sum(jnp.einsum("oe,bel->bol", params["wconv"][:, :, k], xp[:, :, k:k + L])
               for k in range(3)) + params["bconv"][None, :, None]
    x_cnn = jnp.max(conv, axis=-1)                             # (B, H)
    anorm = _dense_norm_adj(edge_index, graph_x.shape[0])
    x_gcn = anorm @ (graph_x @ params["wgcn"].T) + params["bgcn"][None, :]
    x_gcn = x_gcn.mean(axis=0)                                 # (H,)
    feat = jnp.concatenate(
        [x_cnn, jnp.broadcast_to(x_gcn[None, :], (x_cnn.shape[0], H))], axis=1)
    return feat @ params["wfc"].T + params["bfc"][None, :]


if __name__ == "__main__":
    # Small, module-consistent shapes.
    VOCAB, EMBED, HIDDEN = 32, 16, 64
    B, L, N = 2, 8, 6

    key = jax.random.PRNGKey(0)
    keys = jax.random.split(key, 9)
    params = {
        "emb":   jax.random.normal(keys[0], (VOCAB, EMBED), jnp.float32) * 0.1,
        "wconv": jax.random.normal(keys[1], (HIDDEN, EMBED, 3), jnp.float32) * 0.1,
        "bconv": jax.random.normal(keys[2], (HIDDEN,), jnp.float32) * 0.1,
        "wgcn":  jax.random.normal(keys[3], (HIDDEN, 1), jnp.float32) * 0.1,
        "bgcn":  jax.random.normal(keys[4], (HIDDEN,), jnp.float32) * 0.1,
        "wfc":   jax.random.normal(keys[5], (2, 2 * HIDDEN), jnp.float32) * 0.1,
        "bfc":   jax.random.normal(keys[6], (2,), jnp.float32) * 0.1,
    }

    token_ids = jax.random.randint(keys[7], (B, L), 0, VOCAB, dtype=jnp.int32)
    graph_x = jax.random.normal(keys[8], (N, 1), jnp.float32)
    # Small undirected ring graph (both directions listed, as PyG expects).
    edge_index = jnp.array(
        [[0, 1, 1, 2, 2, 3, 3, 4, 4, 5, 5, 0],
         [1, 0, 2, 1, 3, 2, 4, 3, 5, 4, 0, 5]], dtype=jnp.int32)

    # GCN normalization collapsed to a precomputed column-sum (once per topology).
    gcn_colsum = jax.block_until_ready(precompute_gcn_colsum(edge_index, N))

    out = simple_web_classifier_forward(token_ids, graph_x, gcn_colsum, params)
    out = jax.block_until_ready(out)

    ref = _reference_forward(token_ids, graph_x, edge_index, params)
    assert out.shape == (B, 2)
    # bf16 activation path -> relaxed tolerance vs. the f32 reference.
    assert jnp.allclose(out, ref, atol=2e-2, rtol=2e-2), (out, ref)
    print("KERNEL_OK")
</pallas_src>

<mosaic_0001>
module attributes {stable_mosaic.version = 11 : i64} {
  func.func @_fused_kernel(%arg0: i32, %arg1: memref<16x48xbf16, #tpu.memory_space<vmem>>, %arg2: memref<48x128xbf16, #tpu.memory_space<vmem>>, %arg3: memref<136x128xf32, #tpu.memory_space<vmem>>, %arg4: memref<2x128xf32, #tpu.memory_space<vmem>>) attributes {dimension_semantics = [#tpu.dimension_semantics<parallel>], iteration_bounds = array<i64: 1>, scalar_prefetch = 0 : i64, scratch_operands = 0 : i64, tpu.core_type = #tpu.core_type<tc>, window_params = [{transform_indices = @transform_0, window_bounds = array<i64: 16, 48>}, {pipeline_mode = #tpu.pipeline_mode<synchronous>, transform_indices = @transform_1, window_bounds = array<i64: 48, 128>}, {pipeline_mode = #tpu.pipeline_mode<synchronous>, transform_indices = @transform_2, window_bounds = array<i64: 136, 128>}, {transform_indices = @transform_3, window_bounds = array<i64: 2, 128>}]} {
    %c0 = arith.constant 0 : index
    %c0_0 = arith.constant 0 : index
    %0 = vector.load %arg1[%c0, %c0_0] : memref<16x48xbf16, #tpu.memory_space<vmem>>, vector<16x48xbf16>
    %c0_1 = arith.constant 0 : index
    %c0_2 = arith.constant 0 : index
    %1 = vector.load %arg2[%c0_1, %c0_2] : memref<48x128xbf16, #tpu.memory_space<vmem>>, vector<48x128xbf16>
    %cst = arith.constant dense<0.000000e+00> : vector<16x128xf32>
    %2 = tpu.matmul %0, %1, %cst {dimension_numbers = #tpu.dot_dimension_numbers<[1], [0], [0], [1], [0, 0, 1, 1], [], []>} : vector<16x48xbf16>, vector<48x128xbf16>, vector<16x128xf32> -> vector<16x128xf32>
    %3 = vector.shape_cast %2 : vector<16x128xf32> to vector<2x8x128xf32>
    %cst_3 = arith.constant dense<0xFF800000> : vector<2x128xf32>
    %4 = vector.multi_reduction <maximumf>, %3, %cst_3 [1] : vector<2x8x128xf32> to vector<2x128xf32>
    %c0_4 = arith.constant 0 : index
    %c0_5 = arith.constant 0 : index
    %5 = vector.load %arg3[%c0_4, %c0_5] : memref<136x128xf32, #tpu.memory_space<vmem>>, vector<128x128xf32>
    %c128 = arith.constant 128 : index
    %c0_6 = arith.constant 0 : index
    %6 = vector.load %arg3[%c128, %c0_6] : memref<136x128xf32, #tpu.memory_space<vmem>>, vector<1x128xf32>
    %cst_7 = arith.constant dense<0.000000e+00> : vector<2x128xf32>
    %7 = tpu.matmul %4, %5, %cst_7 {dimension_numbers = #tpu.dot_dimension_numbers<[1], [0], [0], [1], [0, 0, 1, 1], [], []>} : vector<2x128xf32>, vector<128x128xf32>, vector<2x128xf32> -> vector<2x128xf32>
    %8 = vector.broadcast %6 : vector<1x128xf32> to vector<2x128xf32>
    %9 = arith.addf %7, %8 : vector<2x128xf32>
    %c0_8 = arith.constant 0 : index
    %c0_9 = arith.constant 0 : index
    %10 = vector.load %arg4[%c0_8, %c0_9] : memref<2x128xf32, #tpu.memory_space<vmem>>, vector<2x128xf32>
    tpu.vector_store %arg4[%c0_8, %c0_9], %9 {strides = array<i32>} : memref<2x128xf32, #tpu.memory_space<vmem>>, vector<2x128xf32>,
    return
  }
  func.func @transform_0(%arg0: i32) -> (i32, i32) {
    %c0_i32 = arith.constant 0 : i32
    %c0_i32_0 = arith.constant 0 : i32
    return %arg0, %c0_i32 : i32, i32
  }
  func.func @transform_1(%arg0: i32) -> (i32, i32) {
    %c0_i32 = arith.constant 0 : i32
    %c0_i32_0 = arith.constant 0 : i32
    %c0_i32_1 = arith.constant 0 : i32
    return %c0_i32, %c0_i32_0 : i32, i32
  }
  func.func @transform_2(%arg0: i32) -> (i32, i32) {
    %c0_i32 = arith.constant 0 : i32
    %c0_i32_0 = arith.constant 0 : i32
    %c0_i32_1 = arith.constant 0 : i32
    return %c0_i32, %c0_i32_0 : i32, i32
  }
  func.func @transform_3(%arg0: i32) -> (i32, i32) {
    %c0_i32 = arith.constant 0 : i32
    %c0_i32_0 = arith.constant 0 : i32
    return %arg0, %c0_i32 : i32, i32
  }
}

</mosaic_0001>

<llo_original>
// kernel: simple_web_classifier_forward.1
$region0: #{simple_web_classifier_forward.1}
  #allocation0 [shape = 'u32[]', space=smem, size = 0x4, offset = 0x4, fixed_abs, tag = 'smem constant byte address 0x4 - core index']
  #allocation1 [shape = 'u32[144,128]{1,0:T(1,128)}', space=vmem, size = 0x12000, scoped, tag = 'internal scratch']
  %s0 = inlined_call_operand.vmem [shape: bf16[16,48], index: 0, kind: input, shape index: {}]
  %s1 = inlined_call_operand.vmem [shape: bf16[48,128], index: 1, kind: input, shape index: {}]
  %s2 = inlined_call_operand.vmem [shape: f32[136,128], index: 2, kind: input, shape index: {}]
  %s3 = inlined_call_operand.hbm [shape: f32[2,128], index: 3, kind: output, shape index: {}]
  %s4 = sld [smem:[#allocation0]]
  $region22: #{simple_web_classifier_forward.1} parent=0
    _
  %s6 = ssub.s32 1, %s4
  %s7 = scalar_select 0, %s6, %s4
  $region1: #{simple_web_classifier_forward.1} parent=0
    #allocation2 [shape = 'u8[1024]{0}', space=vmem, size = 0x400, scoped, tag = 'output window, operand 0, single buffered']
    #allocation3 [shape = 's32[1]{0}', space=sflag, size = 0x4, scoped, tag = 'scoped memory for simple_web_classifier_forward.1']
    %8 = vsyncpa [#allocation3], 0
    // Predicated region
    $region2: #{simple_web_classifier_forward.1} parent=1 // pred_check
      _
    $region3: #{simple_web_classifier_forward.1} parent=1 // pred_check_branch
      %10 = sbr.rel (0) target = $region5
    $region4: #{simple_web_classifier_forward.1} parent=1 // pred_region
      _
    $region5: #{simple_web_classifier_forward.1} parent=1 // pred_fallthru
      _
    // Predicated region
    $region6: #{simple_web_classifier_forward.1} parent=1 // pred_check
      _
    $region7: #{simple_web_classifier_forward.1} parent=1 // pred_check_branch
      %12 = sbr.rel (0) target = $region9
    $region8: #{simple_web_classifier_forward.1} parent=1 // pred_region
      _
    $region9: #{simple_web_classifier_forward.1} parent=1 // pred_fallthru
      _
    // Predicated region
    $region10: #{simple_web_classifier_forward.1} parent=1 // pred_check
      _
    $region11: #{simple_web_classifier_forward.1} parent=1 // pred_check_branch
      %14 = sbr.rel (0) target = $region13
    $region12: #{simple_web_classifier_forward.1} parent=1 // pred_region
      _
    $region13: #{simple_web_classifier_forward.1} parent=1 // pred_fallthru
      _
    %v16 = vld [vmem:[%s0] sm:$0xf]
    %v17 = vld [vmem:[%s0 + $0x4] sm:$0xf]
    %v18 = vld [vmem:[%s1] sm:$0xf]
    %v19 = vld [vmem:[%s1 + $0x4] sm:$0xf]
    %v20 = vld [vmem:[%s1 + $0x8] sm:$0xf]
    %v21 = vld [vmem:[%s1 + $0xc] sm:$0xf]
    %v22 = vld [vmem:[%s1 + $0x10] sm:$0xf]
    %v23 = vld [vmem:[%s1 + $0x14] sm:$0xf]
    %v26 = vunpack.c.l.b16 %v16
    %v27 = vunpack.c.l.b16 %v17
    %v28 = vpack.c.b16 %v27, %v26
    %v35 = vunpack.c.l.b16 %v18
    %v36 = vunpack.c.l.b16 %v19
    %v37 = vunpack.c.l.b16 %v20
    %v38 = vunpack.c.l.b16 %v21
    %v39 = vunpack.c.l.b16 %v22
    %v40 = vunpack.c.l.b16 %v23
    %v41 = vpack.c.b16 %v36, %v35
    %v42 = vpack.c.b16 %v38, %v37
    %v43 = vpack.c.b16 %v40, %v39
    %vm47 = vcmask 392192
    %v49 = vsel %vm47, %v28, 0
    %51 = vmatprep.subr.bf16.mxu0 0
    %52 = vmatpush1.bf16.msra.mxu0 %v41
    %53 = vmatprep.subr.bf16.mxu0 0
    %54 = vmatpush1.bf16.msra.mxu0 %v42
    %55 = vmatprep.subr.bf16.mxu0 0
    %56 = vmatpush1.bf16.msra.mxu0 %v43
    %57 = vmatprep.subr.bf16.mxu0 0
    %58 = vmatpush1.bf16.msra.mxu0 0
    %59 = vmatprep.subr.bf16.mxu0 0
    %60 = vmatpush1.bf16.msra.mxu0 0
    %61 = vmatprep.subr.bf16.mxu0 0
    %62 = vmatpush1.bf16.msra.mxu0 0
    %63 = vmatprep.subr.bf16.mxu0 0
    %64 = vmatpush1.bf16.msra.mxu0 0
    %65 = vmatprep.subr.bf16.mxu0 0
    %66 = vmatpush1.bf16.msra.mxu0 0
    %67 = vmatprep.subr.bf16.mxu0 0
    %68 = vmatpush1.bf16.msra.mxu0 0
    %69 = vmatprep.subr.bf16.mxu0 0
    %70 = vmatpush1.bf16.msra.mxu0 0
    %71 = vmatprep.subr.bf16.mxu0 0
    %72 = vmatpush1.bf16.msra.mxu0 0
    %73 = vmatprep.subr.bf16.mxu0 0
    %74 = vmatpush1.bf16.msra.mxu0 0
    %75 = vmatprep.subr.bf16.mxu0 0
    %76 = vmatpush1.bf16.msra.mxu0 0
    %77 = vmatprep.subr.bf16.mxu0 0
    %78 = vmatpush1.bf16.msra.mxu0 0
    %79 = vmatprep.subr.bf16.mxu0 0
    %80 = vmatpush1.bf16.msra.mxu0 0
    %81 = vmatprep.subr.bf16.mxu0 0
    %82 = vmatpush1.bf16.msra.mxu0 0
    %83 = vmatprep.mubr.bf16.mxu0 0
    %84 = vmatmul.mubr.bf16.gmra.mrb[0].mxu0 %v49
    %v85 = vpop.f32.mrb[0].mxu0
    %v86 = vadd.f32 0.0, %v85
    %v87 = vpop.f32.mrb[0].mxu0
    %v88 = vpop.f32.mrb[0].mxu0
    %v89 = vadd.f32 0.0, %v88
    %v90 = vpop.f32.mrb[0].mxu0
    %91 = vdwg.mxu0
    %v92 = vrot.slane %v86, 4
    %v93 = vmax.f32 %v86, %v92
    %v94 = vrot.slane %v93, 2
    %v95 = vmax.f32 %v93, %v94
    %v96 = vrot.slane %v95, 1
    %v97 = vmax.f32 %v95, %v96
    %v98 = vrot.slane %v89, 4
    %v99 = vmax.f32 %v89, %v98
    %v100 = vrot.slane %v99, 2
    %v101 = vmax.f32 %v99, %v100
    %v102 = vrot.slane %v101, 1
    %v103 = vmax.f32 %v101, %v102
    %v104 = vld [vmem:[%s2] sm:$0xff]
    %v105 = vld [vmem:[%s2 + $0x8] sm:$0xff]
    %v106 = vld [vmem:[%s2 + $0x10] sm:$0xff]
    %v107 = vld [vmem:[%s2 + $0x18] sm:$0xff]
    %v108 = vld [vmem:[%s2 + $0x20] sm:$0xff]
    %v109 = vld [vmem:[%s2 + $0x28] sm:$0xff]
    %v110 = vld [vmem:[%s2 + $0x30] sm:$0xff]
    %v111 = vld [vmem:[%s2 + $0x38] sm:$0xff]
    %v112 = vld [vmem:[%s2 + $0x40] sm:$0xff]
    %v113 = vld [vmem:[%s2 + $0x48] sm:$0xff]
    %v114 = vld [vmem:[%s2 + $0x50] sm:$0xff]
    %v115 = vld [vmem:[%s2 + $0x58] sm:$0xff]
    %v116 = vld [vmem:[%s2 + $0x60] sm:$0xff]
    %v117 = vld [vmem:[%s2 + $0x68] sm:$0xff]
    %v118 = vld [vmem:[%s2 + $0x70] sm:$0xff]
    %v119 = vld [vmem:[%s2 + $0x78] sm:$0xff]
    %v120 = vld [vmem:[%s2 + $0x80] sm:$0x1]
    %v121 = vlaneseq
    %v122 = vshrl.u32 %v121, 7
    %v123 = vsub.s32 0, %v122
    %v124 = vrot.slane %v120, %v123
    %vm127 = vcmask 1041409
    %v128 = vsel %vm127, %v103, %v97
    %130 = vmatprep.subr.mxu0 0.0
    %131 = vmatpush1.msra.mxu0 %v104
    %132 = vmatprep.subr.mxu0 0.0
    %133 = vmatpush1.msra.mxu0 %v105
    %134 = vmatprep.subr.mxu0 0.0
    %135 = vmatpush1.msra.mxu0 %v106
    %136 = vmatprep.subr.mxu0 0.0
    %137 = vmatpush1.msra.mxu0 %v107
    %138 = vmatprep.subr.mxu0 0.0
    %139 = vmatpush1.msra.mxu0 %v108
    %140 = vmatprep.subr.mxu0 0.0
    %141 = vmatpush1.msra.mxu0 %v109
    %142 = vmatprep.subr.mxu0 0.0
    %143 = vmatpush1.msra.mxu0 %v110
    %144 = vmatprep.subr.mxu0 0.0
    %145 = vmatpush1.msra.mxu0 %v111
    %146 = vmatprep.subr.mxu0 0.0
    %147 = vmatpush1.msra.mxu0 %v112
    %148 = vmatprep.subr.mxu0 0.0
    %149 = vmatpush1.msra.mxu0 %v113
    %150 = vmatprep.subr.mxu0 0.0
    %151 = vmatpush1.msra.mxu0 %v114
    %152 = vmatprep.subr.mxu0 0.0
    %153 = vmatpush1.msra.mxu0 %v115
    %154 = vmatprep.subr.mxu0 0.0
    %155 = vmatpush1.msra.mxu0 %v116
    %156 = vmatprep.subr.mxu0 0.0
    %157 = vmatpush1.msra.mxu0 %v117
    %158 = vmatprep.subr.mxu0 0.0
    %159 = vmatpush1.msra.mxu0 %v118
    %160 = vmatprep.subr.mxu0 0.0
    %161 = vmatpush1.msra.mxu0 %v119
    %162 = vmatprep.subr.mxu0 0.0
    %163 = vmatpush1.msra.mxu0 0.0
    %164 = vmatprep.subr.mxu0 0.0
    %165 = vmatpush1.msra.mxu0 0.0
    %166 = vmatprep.subr.mxu0 0.0
    %167 = vmatpush1.msra.mxu0 0.0
    %168 = vmatprep.subr.mxu0 0.0
    %169 = vmatpush1.msra.mxu0 0.0
    %170 = vmatprep.subr.mxu0 0.0
    %171 = vmatpush1.msra.mxu0 0.0
    %172 = vmatprep.subr.mxu0 0.0
    %173 = vmatpush1.msra.mxu0 0.0
    %174 = vmatprep.subr.mxu0 0.0
    %175 = vmatpush1.msra.mxu0 0.0
    %176 = vmatprep.subr.mxu0 0.0
    %177 = vmatpush1.msra.mxu0 0.0
    %178 = vmatprep.subr.mxu0 0.0
    %179 = vmatpush1.msra.mxu0 0.0
    %180 = vmatprep.subr.mxu0 0.0
    %181 = vmatpush1.msra.mxu0 0.0
    %182 = vmatprep.subr.mxu0 0.0
    %183 = vmatpush1.msra.mxu0 0.0
    %184 = vmatprep.subr.mxu0 0.0
    %185 = vmatpush1.msra.mxu0 0.0
    %186 = vmatprep.subr.mxu0 0.0
    %187 = vmatpush1.msra.mxu0 0.0
    %188 = vmatprep.subr.mxu0 0.0
    %189 = vmatpush1.msra.mxu0 0.0
    %190 = vmatprep.subr.mxu0 0.0
    %191 = vmatpush1.msra.mxu0 0.0
    %192 = vmatprep.subr.mxu0 0.0
    %193 = vmatpush1.msra.mxu0 0.0
    %194 = vmatprep.mubr.f32.mxu0 0.0
    %195 = vmatmul.mubr.f32.gmra.mrb[0].mxu0 %v128
    %v196 = vpop.f32.mrb[0].mxu0
    %v197 = vadd.f32 %v124, %v196
    %v198 = vpop.f32.mrb[0].mxu0
    %199 = vdwg.mxu0
    %200 = vst [vmem:[#allocation2] sm:$0x3] %v197
    // Predicated region
    $region14: #{simple_web_classifier_forward.1} parent=1 // pred_check
      _
    $region15: #{simple_web_classifier_forward.1} parent=1 // pred_check_branch
      %202 = sbr.rel (0) target = $region17
    $region16: #{simple_web_classifier_forward.1} parent=1 // pred_region
      %s204 = ssub.s32 32, 32
      %205 = vsyncadd [#allocation3], %s204
      %s207 = sshll.u32 [#allocation2], 4
      %s208 = int_to_ptr.vmem [resolvable:$true] %s207
      %210 = dma.vmem_to_hbm [thread:$0]  %s208, 32, %s3, [#allocation3]
    $region17: #{simple_web_classifier_forward.1} parent=1 // pred_fallthru
      _
    // Predicated region
    $region18: #{simple_web_classifier_forward.1} parent=1 // pred_check
      _
    $region19: #{simple_web_classifier_forward.1} parent=1 // pred_check_branch
      %212 = sbr.rel (0) target = $region21
    $region20: #{simple_web_classifier_forward.1} parent=1 // pred_region
      %213 = dma.done [#allocation3], 32
    $region21: #{simple_web_classifier_forward.1} parent=1 // pred_fallthru
      _
    %214 = vsyncpa [#allocation3], 1

</llo_original>
